<compile_context>
chip_gen: v7x
topology: tpu7x:2x2x1
jax: 0.10.0
libtpu: 0.0.40
codegen_flags: <defaults>
</compile_context>

<pallas_src>
import functools

import jax
import jax.numpy as jnp
from jax.experimental import pallas as pl
from jax.experimental.pallas import tpu as pltpu

EPS = 1e-6


def _int_pow(x, n: int):
    """x ** n for a static positive integer n using only VPU multiplies."""
    assert n >= 1
    result = None
    base = x
    while n > 0:
        if n & 1:
            result = base if result is None else result * base
        n >>= 1
        if n:
            base = base * base
    return result


def _gem1d_kernel(p_ref, x_ref, o_ref, acc_ref, *, L, TL, p_static):
    # p_ref  : SMEM (1,) f32            -- learnable exponent p
    # x_ref  : VMEM (TR, TL)            -- row/L tile of the flattened input
    # o_ref  : VMEM (TR, 1)             -- per-row GeM output (written at last k)
    # acc_ref: VMEM (TR, 1) f32 scratch -- running sum of clamp(x, eps) ** p
    k = pl.program_id(1)

    @pl.when(k == 0)
    def _init():
        acc_ref[...] = jnp.zeros_like(acc_ref)

    x = x_ref[...]
    # clamp in the native dtype, upcast to f32 only for the pow / accumulation
    xc = jnp.maximum(x, jnp.asarray(EPS, dtype=x.dtype)).astype(jnp.float32)

    if p_static is not None:
        xp = _int_pow(xc, p_static)                 # VPU only, no EUP
    else:
        p = p_ref[0].astype(jnp.float32)
        xp = jnp.exp(p * jnp.log(xc))               # xc > 0, so this == xc ** p

    if L % TL != 0:
        # mask out the padded tail of the last (partial) L tile
        col = jax.lax.broadcasted_iota(jnp.int32, xp.shape, 1)
        xp = jnp.where(k * TL + col < L, xp, 0.0)

    acc_ref[...] += jnp.sum(xp, axis=-1, keepdims=True)

    @pl.when(k == pl.num_programs(1) - 1)
    def _finish():
        p = (jnp.float32(p_static) if p_static is not None
             else p_ref[0].astype(jnp.float32))
        m = acc_ref[...] * jnp.float32(1.0 / L)     # mean over the full L axis
        o_ref[...] = jnp.exp(jnp.log(m) / p).astype(o_ref.dtype)


def _choose_tiles(R, L, itemsize):
    """Pick (TR, TL): ~4 MiB input blocks, (8,128)-aligned, VMEM-safe on all chips."""
    MAX_TL = 2048                        # multiple of 128
    TL = L if L <= MAX_TL else MAX_TL
    target_bytes = 4 * 1024 * 1024       # 2x double-buffer => ~8 MiB of VMEM
    tr = max(8, (target_bytes // (TL * itemsize)) // 8 * 8)
    TR = R if tr >= R else tr
    return TR, TL


def _maybe_static_int_p(p):
    """Return p as a small positive Python int if concrete & integral, else None."""
    try:
        val = float(jax.device_get(p).reshape(-1)[0])
    except Exception:                    # traced / abstract value inside jit
        return None
    if val > 0 and val == int(val) and int(val) <= 16:
        return int(val)
    return None


def gem1d(x, p, *, p_static="auto"):
    """GeM pooling. x: (N, C, L), p: (1,) f32 -> (N, C, 1).

    p_static:
      "auto" -- use the integer fast path when p is concrete and integral
      None   -- always use the generic exp/log path (works with traced p)
      int    -- force the integer fast path with that exponent
    """
    N, C, L = x.shape
    R = N * C
    xf = x.reshape(R, L)
    TR, TL = _choose_tiles(R, L, x.dtype.itemsize)
    grid = (pl.cdiv(R, TR), pl.cdiv(L, TL))

    if p_static == "auto":
        p_static = _maybe_static_int_p(p)

    kernel = functools.partial(_gem1d_kernel, L=L, TL=TL, p_static=p_static)
    n_trans = (0 if p_static is not None else 2 * R * L) + 2 * R

    out = pl.pallas_call(
        kernel,
        out_shape=jax.ShapeDtypeStruct((R, 1), x.dtype),
        grid=grid,
        in_specs=[
            pl.BlockSpec(memory_space=pltpu.MemorySpace.SMEM),     # p (scalar)
            pl.BlockSpec((TR, TL), lambda i, k: (i, k)),           # x tile
        ],
        out_specs=pl.BlockSpec((TR, 1), lambda i, k: (i, 0)),
        scratch_shapes=[pltpu.VMEM((TR, 1), jnp.float32)],
        compiler_params=pltpu.CompilerParams(
            dimension_semantics=("parallel", "arbitrary")),
        cost_estimate=pl.CostEstimate(
            flops=3 * R * L,
            transcendentals=n_trans,
            bytes_accessed=R * L * x.dtype.itemsize + R * x.dtype.itemsize),
    )(p, xf)
    return out.reshape(N, C, 1)


def gem1d_ref(x, p):
    """Pure-JAX reference mirroring the PyTorch forward."""
    xc = jnp.maximum(x, EPS)
    xp = xc ** p[0]
    m = jnp.mean(xp, axis=-1, keepdims=True)
    return m ** (1.0 / p[0])


if __name__ == "__main__":
    key = jax.random.PRNGKey(0)

    # Small shapes consistent with the module: batch=2, channels=4, length=16.
    N, C, L = 2, 4, 16
    x = jax.random.normal(key, (N, C, L), dtype=jnp.float32)
    p = jnp.ones((1,), dtype=jnp.float32) * 3.0     # __init__: p = ones(1) * 3

    ref = gem1d_ref(x, p)

    # Auto (static-integer-p, EUP-free) fast path.
    out = jax.block_until_ready(gem1d(x, p))
    assert out.shape == (N, C, 1)
    assert jnp.allclose(out, ref, rtol=1e-5, atol=1e-5), (out, ref)

    # Generic (traced-p compatible, exp/log) path.
    out_gen = jax.block_until_ready(gem1d(x, p, p_static=None))
    assert jnp.allclose(out_gen, ref, rtol=1e-5, atol=1e-5), (out_gen, ref)

    # Larger L exercising the tiled reduction (multiple L tiles + tail mask).
    L2 = 4100
    x2 = jax.random.normal(jax.random.PRNGKey(1), (N, C, L2), dtype=jnp.float32)
    out2 = jax.block_until_ready(gem1d(x2, p))
    ref2 = gem1d_ref(x2, p)
    assert jnp.allclose(out2, ref2, rtol=1e-5, atol=1e-5), (out2, ref2)

    print("KERNEL_OK")
</pallas_src>

<mosaic_0001>
module attributes {stable_mosaic.version = 11 : i64} {
  func.func @_gem1d_kernel(%arg0: i32, %arg1: i32, %arg2: memref<1xf32, #tpu.memory_space<smem>>, %arg3: memref<8x16xf32, #tpu.memory_space<vmem>>, %arg4: memref<8x1xf32, #tpu.memory_space<vmem>>, %arg5: memref<8x1xf32, #tpu.memory_space<vmem>>) attributes {dimension_semantics = [#tpu.dimension_semantics<parallel>, #tpu.dimension_semantics<arbitrary>], iteration_bounds = array<i64: 1, 1>, scalar_prefetch = 0 : i64, scratch_operands = 1 : i64, tpu.core_type = #tpu.core_type<tc>, window_params = [{transform_indices = @transform_0, window_bounds = array<i64: 1>}, {transform_indices = @transform_1, window_bounds = array<i64: 8, 16>}, {transform_indices = @transform_2, window_bounds = array<i64: 8, 1>}]} {
    %c0_i32 = arith.constant 0 : i32
    %0 = arith.cmpi eq, %arg1, %c0_i32 : i32
    %1 = arith.extui %0 : i1 to i32
    %c0_i32_0 = arith.constant 0 : i32
    %2 = arith.cmpi ne, %1, %c0_i32_0 : i32
    scf.if %2 {
      %cst_9 = arith.constant 0.000000e+00 : f32
      %16 = vector.broadcast %cst_9 : f32 to vector<8x1xf32>
      %c0_10 = arith.constant 0 : index
      %c0_11 = arith.constant 0 : index
      %17 = vector.load %arg5[%c0_10, %c0_11] : memref<8x1xf32, #tpu.memory_space<vmem>>, vector<8x1xf32>
      tpu.vector_store %arg5[%c0_10, %c0_11], %16 {strides = array<i32>} : memref<8x1xf32, #tpu.memory_space<vmem>>, vector<8x1xf32>,
    } else {
    }
    %c0 = arith.constant 0 : index
    %c0_1 = arith.constant 0 : index
    %3 = vector.load %arg3[%c0, %c0_1] : memref<8x16xf32, #tpu.memory_space<vmem>>, vector<8x16xf32>
    %cst = arith.constant 9.99999997E-7 : f32
    %4 = vector.broadcast %cst : f32 to vector<8x16xf32>
    %5 = arith.maximumf %3, %4 : vector<8x16xf32>
    %6 = arith.mulf %5, %5 : vector<8x16xf32>
    %7 = arith.mulf %5, %6 : vector<8x16xf32>
    %c0_2 = arith.constant 0 : index
    %c0_3 = arith.constant 0 : index
    %8 = vector.load %arg5[%c0_2, %c0_3] : memref<8x1xf32, #tpu.memory_space<vmem>>, vector<8x1xf32>
    %cst_4 = arith.constant dense<0.000000e+00> : vector<8xf32>
    %9 = vector.multi_reduction <add>, %7, %cst_4 [1] : vector<8x16xf32> to vector<8xf32>
    %10 = vector.shape_cast %9 : vector<8xf32> to vector<8x1xf32>
    %11 = arith.addf %8, %10 : vector<8x1xf32>
    %c0_5 = arith.constant 0 : index
    %c0_6 = arith.constant 0 : index
    %12 = vector.load %arg5[%c0_5, %c0_6] : memref<8x1xf32, #tpu.memory_space<vmem>>, vector<8x1xf32>
    tpu.vector_store %arg5[%c0_5, %c0_6], %11 {strides = array<i32>} : memref<8x1xf32, #tpu.memory_space<vmem>>, vector<8x1xf32>,
    %c0_i32_7 = arith.constant 0 : i32
    %13 = arith.cmpi eq, %arg1, %c0_i32_7 : i32
    %14 = arith.extui %13 : i1 to i32
    %c0_i32_8 = arith.constant 0 : i32
    %15 = arith.cmpi ne, %14, %c0_i32_8 : i32
    scf.if %15 {
      %c0_9 = arith.constant 0 : index
      %c0_10 = arith.constant 0 : index
      %16 = vector.load %arg5[%c0_9, %c0_10] : memref<8x1xf32, #tpu.memory_space<vmem>>, vector<8x1xf32>
      %cst_11 = arith.constant 6.250000e-02 : f32
      %17 = vector.broadcast %cst_11 : f32 to vector<8x1xf32>
      %18 = arith.mulf %16, %17 : vector<8x1xf32>
      %19 = math.log %18 : vector<8x1xf32>
      %cst_12 = arith.constant 3.000000e+00 : f32
      %20 = vector.broadcast %cst_12 : f32 to vector<8x1xf32>
      %21 = arith.divf %19, %20 : vector<8x1xf32>
      %22 = math.exp %21 : vector<8x1xf32>
      %c0_13 = arith.constant 0 : index
      %c0_14 = arith.constant 0 : index
      %23 = vector.load %arg4[%c0_13, %c0_14] : memref<8x1xf32, #tpu.memory_space<vmem>>, vector<8x1xf32>
      tpu.vector_store %arg4[%c0_13, %c0_14], %22 {strides = array<i32>} : memref<8x1xf32, #tpu.memory_space<vmem>>, vector<8x1xf32>,
    } else {
    }
    return
  }
  func.func @transform_0(%arg0: i32, %arg1: i32) -> i32 {
    %c0_i32 = arith.constant 0 : i32
    %c0_i32_0 = arith.constant 0 : i32
    return %c0_i32 : i32
  }
  func.func @transform_1(%arg0: i32, %arg1: i32) -> (i32, i32) {
    %c0_i32 = arith.constant 0 : i32
    return %arg0, %arg1 : i32, i32
  }
  func.func @transform_2(%arg0: i32, %arg1: i32) -> (i32, i32) {
    %c0_i32 = arith.constant 0 : i32
    %c0_i32_0 = arith.constant 0 : i32
    return %arg0, %c0_i32 : i32, i32
  }
}

</mosaic_0001>

<llo_original>
// kernel: tpu_custom_call.1
$region0: #{tpu_custom_call.1}
  #allocation0 [shape = 'u32[]', space=smem, size = 0x4, offset = 0x4, fixed_abs, tag = 'smem constant byte address 0x4 - core index']
  #allocation1 [shape = 'u32[144,128]{1,0:T(1,128)}', space=vmem, size = 0x12000, scoped, tag = 'internal scratch']
  #allocation2 [shape = 'f32[8,1]{1,0:T(8,128)}', space=vmem, size = 0x1000, scoped, tag = 'scratch operand']
  #allocation3 [shape = 'f32[1]{0:T(128)S(6)}', space=smem, size = 0x200, scoped, tag = 'scoped memory for tpu_custom_call.1']
  %s0 = inlined_call_operand.<no memory space> [shape: f32[1], index: 0, kind: input, shape index: {}]
  %s1 = inlined_call_operand.hbm [shape: f32[8,16], index: 1, kind: input, shape index: {}]
  %s2 = inlined_call_operand.vmem [shape: f32[8,1], index: 2, kind: output, shape index: {}]
  %s3 = sld [smem:[#allocation0]]
  $region30: #{tpu_custom_call.1} parent=0
    _
  %s5 = ssub.s32 1, %s3
  %s6 = scalar_select 0, %s5, %s3
  %7 = sst [smem:[#allocation3]] %s0
  $region1: #{tpu_custom_call.1} parent=0
    #allocation4 [shape = 'u8[4096]{0}', space=vmem, size = 0x1000, scoped, tag = 'input window, operand 1, single buffered']
    #allocation5 [shape = 's32[1]{0}', space=sflag, size = 0x4, scoped, tag = 'scoped memory for tpu_custom_call.1']
    %8 = vsyncpa [#allocation5], 0
    // Predicated region
    $region2: #{tpu_custom_call.1} parent=1 // pred_check
      _
    $region3: #{tpu_custom_call.1} parent=1 // pred_check_branch
      %10 = sbr.rel (0) target = $region5
    $region4: #{tpu_custom_call.1} parent=1 // pred_region
      _
    $region5: #{tpu_custom_call.1} parent=1 // pred_fallthru
      _
    // Predicated region
    $region6: #{tpu_custom_call.1} parent=1 // pred_check
      _
    $region7: #{tpu_custom_call.1} parent=1 // pred_check_branch
      %12 = sbr.rel (0) target = $region9
    $region8: #{tpu_custom_call.1} parent=1 // pred_region
      %s14 = ssub.s32 128, 128
      %15 = vsyncadd [#allocation5], %s14
      %s17 = sshll.u32 [#allocation4], 4
      %s18 = int_to_ptr.vmem [resolvable:$true] %s17
      %20 = dma.hbm_to_vmem [thread:$0]  %s1, 128, %s18, [#allocation5]
    $region9: #{tpu_custom_call.1} parent=1 // pred_fallthru
      _
    // Predicated region
    $region10: #{tpu_custom_call.1} parent=1 // pred_check
      _
    $region11: #{tpu_custom_call.1} parent=1 // pred_check_branch
      %22 = sbr.rel (0) target = $region13
    $region12: #{tpu_custom_call.1} parent=1 // pred_region
      %23 = dma.done [#allocation5], 128
    $region13: #{tpu_custom_call.1} parent=1 // pred_fallthru
      _
    %p24 = scmp.eq.s32.totalorder 0, 0
    // Predicated region
    $region14: #{tpu_custom_call.1} parent=1 // pred_check
      %p25 = pneg %p24
    $region15: #{tpu_custom_call.1} parent=1 // pred_check_branch
      %27 = sbr.rel (%p25) target = $region17
    $region16: #{tpu_custom_call.1} parent=1 // pred_region
      %vm28 = vcmask 7168
      %29 = vst.msk [vmem:[#allocation2] sm:$0xff] %vm28, 0.0
    $region17: #{tpu_custom_call.1} parent=1 // pred_fallthru
      _
    %v30 = vld [vmem:[#allocation4] sm:$0xff]
    %v31 = vmax.f32 %v30, 1e-06
    %v32 = vmul.f32 %v31, %v31
    %v33 = vmul.f32 %v31, %v32
    %v34 = vld [vmem:[#allocation2] sm:$0xff]
    %vm35 = vcmask 130048
    %v36 = vsel %vm35, %v33, 0.0
    %37 = vadd.xlane.f32.xlu0 %v36
    %v38 = vpop.xlane.xlu0 %37
    %v39 = vadd.f32 %v34, %v38
    %vm40 = vcmask 7168
    %41 = vst.msk [vmem:[#allocation2] sm:$0xff] %vm40, %v39
    // Predicated region
    $region18: #{tpu_custom_call.1} parent=1 // pred_check
      %p42 = pneg %p24
    $region19: #{tpu_custom_call.1} parent=1 // pred_check_branch
      %44 = sbr.rel (%p42) target = $region21
    $region20: #{tpu_custom_call.1} parent=1 // pred_region
      %v45 = vld [vmem:[#allocation2] sm:$0xff]
      %v46 = vmul.f32 %v45, 0.0625
      %v47 = vlog2.pop %v46
      %v48 = vmul.f32 %v47, 0.6931472
      %v49 = vrcp.pop 3.0
      %v50 = vmul.f32 %v48, %v49
      %v51 = vmul.f32 %v50, 1.442695
      %v52 = vpow.pop %v51
      %53 = vst.msk [vmem:[%s2] sm:$0xff] %vm40, %v52
    $region21: #{tpu_custom_call.1} parent=1 // pred_fallthru
      _
    // Predicated region
    $region22: #{tpu_custom_call.1} parent=1 // pred_check
      _
    $region23: #{tpu_custom_call.1} parent=1 // pred_check_branch
      %55 = sbr.rel (0) target = $region25
    $region24: #{tpu_custom_call.1} parent=1 // pred_region
      _
    $region25: #{tpu_custom_call.1} parent=1 // pred_fallthru
      _
    // Predicated region
    $region26: #{tpu_custom_call.1} parent=1 // pred_check
      _
    $region27: #{tpu_custom_call.1} parent=1 // pred_check_branch
      %57 = sbr.rel (0) target = $region29
    $region28: #{tpu_custom_call.1} parent=1 // pred_region
      _
    $region29: #{tpu_custom_call.1} parent=1 // pred_fallthru
      _
    %58 = vsyncpa [#allocation5], 1

</llo_original>
